<compile_context>
chip_gen: v7x
topology: tpu7x:2x2x1
jax: 0.10.0
libtpu: 0.0.40
codegen_flags: <defaults>
</compile_context>

<pallas_src>
import jax
import jax.numpy as jnp
from jax import lax
from jax.experimental import pallas as pl
from jax.experimental.pallas import tpu as pltpu

EPS = 1e-12     # F.normalize default eps (denom = max(norm, eps))
LANES = 128


def act_tri_kernel(x_ref, w_ref, b_ref, o_ref):
    # x_ref: (1, C_in,  TR, 128) VMEM block (lane-dense flattened H*act_dim axis)
    # w_ref: (C_in, C_out)       SMEM scalars (1x1-conv weight, transposed vs PyTorch)
    # b_ref: (C_out,)            SMEM scalars
    # o_ref: (1, C_out, TR, 128) VMEM block
    c_in = x_ref.shape[1]
    c_out = o_ref.shape[1]

    # Hoist the per-input-channel planes once; each is a dense (TR, 128) f32 slab.
    xs = [x_ref[0, c] for c in range(c_in)]

    # 1x1 conv (channel mix) + ReLU as C_in*C_out broadcast-FMAs on the VPU.
    # Store the un-normalized result directly into o_ref (no ys temporaries) while
    # accumulating the sum of squares over the channel dim.
    ss = None
    for d in range(c_out):
        acc = xs[0] * w_ref[0, d] + b_ref[d]
        for c in range(1, c_in):
            acc = acc + xs[c] * w_ref[c, d]
        y = jnp.maximum(acc, 0.0)                 # ReLU (part of `act`)
        o_ref[0, d] = y
        ss = y * y if ss is None else ss + y * y

    # F.normalize(p=2, dim=1): y / max(||y||_2, eps) == y * rsqrt(max(ss, eps^2)).
    inv = lax.rsqrt(jnp.maximum(ss, EPS * EPS))   # EUP rsqrt, no VPU divide
    for d in range(c_out):
        o_ref[0, d] = o_ref[0, d] * inv           # rescale in place


def _pick_tile_r(R, c_in, c_out, budget_bytes):
    # VMEM working-set model per unit of R (one (1,128) row across all buffers):
    #   double-buffered input + output blocks: 2 * (c_in + c_out)
    #   live in-kernel temporaries (xs, acc, y, ss, inv): ~ c_in + 4
    per_r = 4 * LANES * (2 * (c_in + c_out) + c_in + 4)
    tr = max(8, budget_bytes // per_r)
    if tr >= R:
        return R                                  # full-dim block is always legal
    return max(8, (tr // 8) * 8)                  # keep (8, 128) block constraint


def act_tri_net(x, w, b, act_dim, *, vmem_budget_bytes=28 << 20):
    """x: (N, C_in, H, W) f32 NCHW; w: (C_in, C_out); b: (C_out,).

    Returns (N, C_out, H, act_dim) NCHW, matching the PyTorch forward
    (act = 1x1 conv + ReLU, then L2-normalize over channels).
    """
    N, C_in, H, W = x.shape
    C_out = w.shape[1]
    A = int(act_dim)
    assert 0 < A <= W

    # Lane-dense layout: slice the trailing axis, flatten (H, A) -> P, pad P to a
    # multiple of 128 lanes, and view it as a dense (R, 128) lane grid per channel.
    P = H * A
    R = pl.cdiv(P, LANES)
    P_pad = R * LANES
    x_flat = x[:, :, :, :A].reshape(N, C_in, P)
    if P_pad != P:
        x_flat = jnp.pad(x_flat, ((0, 0), (0, 0), (0, P_pad - P)))
    x4 = x_flat.reshape(N, C_in, R, LANES)

    tile_r = _pick_tile_r(R, C_in, C_out, vmem_budget_bytes)
    grid = (N, pl.cdiv(R, tile_r))                # ragged tail masked by Pallas

    cost = pl.CostEstimate(
        flops=2 * N * P * C_in * C_out,
        transcendentals=N * P,
        bytes_accessed=4 * (N * C_in * P_pad + N * C_out * P_pad
                            + C_in * C_out + C_out),
    )

    out4 = pl.pallas_call(
        act_tri_kernel,
        out_shape=jax.ShapeDtypeStruct((N, C_out, R, LANES), jnp.float32),
        grid_spec=pltpu.PrefetchScalarGridSpec(
            num_scalar_prefetch=0,
            grid=grid,
            in_specs=[
                pl.BlockSpec((1, C_in, tile_r, LANES), lambda n, t: (n, 0, t, 0)),
                pl.BlockSpec(memory_space=pltpu.MemorySpace.SMEM),   # w scalars
                pl.BlockSpec(memory_space=pltpu.MemorySpace.SMEM),   # b scalars
            ],
            out_specs=pl.BlockSpec((1, C_out, tile_r, LANES),
                                   lambda n, t: (n, 0, t, 0)),
        ),
        compiler_params=pltpu.CompilerParams(
            dimension_semantics=("parallel", "parallel"),
            vmem_limit_bytes=64 << 20,
        ),
        cost_estimate=cost,
    )(x4, w, b)

    # Back to the exact PyTorch NCHW output layout (free reshape + slice).
    out = out4.reshape(N, C_out, P_pad)[:, :, :P].reshape(N, C_out, H, A)
    return out


def act_tri_net_ref(x, w, b, act_dim):
    """Pure-JAX reference mirroring the PyTorch forward."""
    x_act = x[:, :, :, :act_dim]
    y = jnp.einsum("nchw,cd->ndhw", x_act, w) + b[None, :, None, None]
    y = jnp.maximum(y, 0.0)
    norm = jnp.sqrt(jnp.sum(y * y, axis=1, keepdims=True))
    return y / jnp.maximum(norm, EPS)


if __name__ == "__main__":
    # Small shapes consistent with the forward: NCHW input, slice last dim to act_dim.
    N, C_in, H, W = 2, 4, 16, 16
    act_dim = 8
    C_out = 8

    key = jax.random.PRNGKey(0)
    kx, kw, kb = jax.random.split(key, 3)
    x = jax.random.normal(kx, (N, C_in, H, W), dtype=jnp.float32)
    # 1x1 conv weight, PyTorch shape (C_out, C_in, 1, 1) -> stored here as (C_in, C_out).
    w = 0.1 * jax.random.normal(kw, (C_in, C_out), dtype=jnp.float32)
    b = 0.1 * jax.random.normal(kb, (C_out,), dtype=jnp.float32)

    out = act_tri_net(x, w, b, act_dim)
    out = jax.block_until_ready(out)

    ref = act_tri_net_ref(x, w, b, act_dim)
    assert out.shape == (N, C_out, H, act_dim)
    assert jnp.allclose(out, ref, atol=1e-5, rtol=1e-5)

    print("KERNEL_OK")
</pallas_src>

<mosaic_0001>
module attributes {stable_mosaic.version = 11 : i64} {
  func.func @act_tri_kernel(%arg0: i32, %arg1: i32, %arg2: memref<1x4x1x128xf32, #tpu.memory_space<vmem>>, %arg3: memref<4x8xf32, #tpu.memory_space<smem>>, %arg4: memref<8xf32, #tpu.memory_space<smem>>, %arg5: memref<1x8x1x128xf32, #tpu.memory_space<vmem>>) attributes {dimension_semantics = [#tpu.dimension_semantics<parallel>, #tpu.dimension_semantics<parallel>], iteration_bounds = array<i64: 2, 1>, scalar_prefetch = 0 : i64, scratch_operands = 0 : i64, tpu.core_type = #tpu.core_type<tc>, window_params = [{transform_indices = @transform_0, window_bounds = array<i64: 1, 4, 1, 128>}, {transform_indices = @transform_1, window_bounds = array<i64: 4, 8>}, {transform_indices = @transform_2, window_bounds = array<i64: 8>}, {transform_indices = @transform_3, window_bounds = array<i64: 1, 8, 1, 128>}]} {
    %c0 = arith.constant 0 : index
    %c0_0 = arith.constant 0 : index
    %c0_1 = arith.constant 0 : index
    %c0_2 = arith.constant 0 : index
    %0 = vector.load %arg2[%c0, %c0_0, %c0_1, %c0_2] : memref<1x4x1x128xf32, #tpu.memory_space<vmem>>, vector<1x1x1x128xf32>
    %1 = vector.shape_cast %0 : vector<1x1x1x128xf32> to vector<1x128xf32>
    %c0_3 = arith.constant 0 : index
    %c1 = arith.constant 1 : index
    %c0_4 = arith.constant 0 : index
    %c0_5 = arith.constant 0 : index
    %2 = vector.load %arg2[%c0_3, %c1, %c0_4, %c0_5] : memref<1x4x1x128xf32, #tpu.memory_space<vmem>>, vector<1x1x1x128xf32>
    %3 = vector.shape_cast %2 : vector<1x1x1x128xf32> to vector<1x128xf32>
    %c0_6 = arith.constant 0 : index
    %c2 = arith.constant 2 : index
    %c0_7 = arith.constant 0 : index
    %c0_8 = arith.constant 0 : index
    %4 = vector.load %arg2[%c0_6, %c2, %c0_7, %c0_8] : memref<1x4x1x128xf32, #tpu.memory_space<vmem>>, vector<1x1x1x128xf32>
    %5 = vector.shape_cast %4 : vector<1x1x1x128xf32> to vector<1x128xf32>
    %c0_9 = arith.constant 0 : index
    %c3 = arith.constant 3 : index
    %c0_10 = arith.constant 0 : index
    %c0_11 = arith.constant 0 : index
    %6 = vector.load %arg2[%c0_9, %c3, %c0_10, %c0_11] : memref<1x4x1x128xf32, #tpu.memory_space<vmem>>, vector<1x1x1x128xf32>
    %7 = vector.shape_cast %6 : vector<1x1x1x128xf32> to vector<1x128xf32>
    %c0_12 = arith.constant 0 : index
    %c0_13 = arith.constant 0 : index
    %8 = memref.load %arg3[%c0_12, %c0_13] : memref<4x8xf32, #tpu.memory_space<smem>>
    %9 = vector.broadcast %8 : f32 to vector<1x128xf32>
    %10 = arith.mulf %1, %9 : vector<1x128xf32>
    %c0_14 = arith.constant 0 : index
    %11 = memref.load %arg4[%c0_14] : memref<8xf32, #tpu.memory_space<smem>>
    %12 = vector.broadcast %11 : f32 to vector<1x128xf32>
    %13 = arith.addf %10, %12 : vector<1x128xf32>
    %c1_15 = arith.constant 1 : index
    %c0_16 = arith.constant 0 : index
    %14 = memref.load %arg3[%c1_15, %c0_16] : memref<4x8xf32, #tpu.memory_space<smem>>
    %15 = vector.broadcast %14 : f32 to vector<1x128xf32>
    %16 = arith.mulf %3, %15 : vector<1x128xf32>
    %17 = arith.addf %13, %16 : vector<1x128xf32>
    %c2_17 = arith.constant 2 : index
    %c0_18 = arith.constant 0 : index
    %18 = memref.load %arg3[%c2_17, %c0_18] : memref<4x8xf32, #tpu.memory_space<smem>>
    %19 = vector.broadcast %18 : f32 to vector<1x128xf32>
    %20 = arith.mulf %5, %19 : vector<1x128xf32>
    %21 = arith.addf %17, %20 : vector<1x128xf32>
    %c3_19 = arith.constant 3 : index
    %c0_20 = arith.constant 0 : index
    %22 = memref.load %arg3[%c3_19, %c0_20] : memref<4x8xf32, #tpu.memory_space<smem>>
    %23 = vector.broadcast %22 : f32 to vector<1x128xf32>
    %24 = arith.mulf %7, %23 : vector<1x128xf32>
    %25 = arith.addf %21, %24 : vector<1x128xf32>
    %cst = arith.constant 0.000000e+00 : f32
    %26 = vector.broadcast %cst : f32 to vector<1x128xf32>
    %27 = arith.maximumf %25, %26 : vector<1x128xf32>
    %c0_21 = arith.constant 0 : index
    %c0_22 = arith.constant 0 : index
    %c0_23 = arith.constant 0 : index
    %c0_24 = arith.constant 0 : index
    %28 = vector.load %arg5[%c0_21, %c0_22, %c0_23, %c0_24] : memref<1x8x1x128xf32, #tpu.memory_space<vmem>>, vector<1x1x1x128xf32>
    %29 = vector.shape_cast %28 : vector<1x1x1x128xf32> to vector<1x128xf32>
    %30 = vector.shape_cast %27 : vector<1x128xf32> to vector<1x1x1x128xf32>
    tpu.vector_store %arg5[%c0_21, %c0_22, %c0_23, %c0_24], %30 {strides = array<i32>} : memref<1x8x1x128xf32, #tpu.memory_space<vmem>>, vector<1x1x1x128xf32>,
    %31 = arith.mulf %27, %27 : vector<1x128xf32>
    %c0_25 = arith.constant 0 : index
    %c1_26 = arith.constant 1 : index
    %32 = memref.load %arg3[%c0_25, %c1_26] : memref<4x8xf32, #tpu.memory_space<smem>>
    %33 = vector.broadcast %32 : f32 to vector<1x128xf32>
    %34 = arith.mulf %1, %33 : vector<1x128xf32>
    %c1_27 = arith.constant 1 : index
    %35 = memref.load %arg4[%c1_27] : memref<8xf32, #tpu.memory_space<smem>>
    %36 = vector.broadcast %35 : f32 to vector<1x128xf32>
    %37 = arith.addf %34, %36 : vector<1x128xf32>
    %c1_28 = arith.constant 1 : index
    %c1_29 = arith.constant 1 : index
    %38 = memref.load %arg3[%c1_28, %c1_29] : memref<4x8xf32, #tpu.memory_space<smem>>
    %39 = vector.broadcast %38 : f32 to vector<1x128xf32>
    %40 = arith.mulf %3, %39 : vector<1x128xf32>
    %41 = arith.addf %37, %40 : vector<1x128xf32>
    %c2_30 = arith.constant 2 : index
    %c1_31 = arith.constant 1 : index
    %42 = memref.load %arg3[%c2_30, %c1_31] : memref<4x8xf32, #tpu.memory_space<smem>>
    %43 = vector.broadcast %42 : f32 to vector<1x128xf32>
    %44 = arith.mulf %5, %43 : vector<1x128xf32>
    %45 = arith.addf %41, %44 : vector<1x128xf32>
    %c3_32 = arith.constant 3 : index
    %c1_33 = arith.constant 1 : index
    %46 = memref.load %arg3[%c3_32, %c1_33] : memref<4x8xf32, #tpu.memory_space<smem>>
    %47 = vector.broadcast %46 : f32 to vector<1x128xf32>
    %48 = arith.mulf %7, %47 : vector<1x128xf32>
    %49 = arith.addf %45, %48 : vector<1x128xf32>
    %cst_34 = arith.constant 0.000000e+00 : f32
    %50 = vector.broadcast %cst_34 : f32 to vector<1x128xf32>
    %51 = arith.maximumf %49, %50 : vector<1x128xf32>
    %c0_35 = arith.constant 0 : index
    %c1_36 = arith.constant 1 : index
    %c0_37 = arith.constant 0 : index
    %c0_38 = arith.constant 0 : index
    %52 = vector.load %arg5[%c0_35, %c1_36, %c0_37, %c0_38] : memref<1x8x1x128xf32, #tpu.memory_space<vmem>>, vector<1x1x1x128xf32>
    %53 = vector.shape_cast %52 : vector<1x1x1x128xf32> to vector<1x128xf32>
    %54 = vector.shape_cast %51 : vector<1x128xf32> to vector<1x1x1x128xf32>
    tpu.vector_store %arg5[%c0_35, %c1_36, %c0_37, %c0_38], %54 {strides = array<i32>} : memref<1x8x1x128xf32, #tpu.memory_space<vmem>>, vector<1x1x1x128xf32>,
    %55 = arith.mulf %51, %51 : vector<1x128xf32>
    %56 = arith.addf %31, %55 : vector<1x128xf32>
    %c0_39 = arith.constant 0 : index
    %c2_40 = arith.constant 2 : index
    %57 = memref.load %arg3[%c0_39, %c2_40] : memref<4x8xf32, #tpu.memory_space<smem>>
    %58 = vector.broadcast %57 : f32 to vector<1x128xf32>
    %59 = arith.mulf %1, %58 : vector<1x128xf32>
    %c2_41 = arith.constant 2 : index
    %60 = memref.load %arg4[%c2_41] : memref<8xf32, #tpu.memory_space<smem>>
    %61 = vector.broadcast %60 : f32 to vector<1x128xf32>
    %62 = arith.addf %59, %61 : vector<1x128xf32>
    %c1_42 = arith.constant 1 : index
    %c2_43 = arith.constant 2 : index
    %63 = memref.load %arg3[%c1_42, %c2_43] : memref<4x8xf32, #tpu.memory_space<smem>>
    %64 = vector.broadcast %63 : f32 to vector<1x128xf32>
    %65 = arith.mulf %3, %64 : vector<1x128xf32>
    %66 = arith.addf %62, %65 : vector<1x128xf32>
    %c2_44 = arith.constant 2 : index
    %c2_45 = arith.constant 2 : index
    %67 = memref.load %arg3[%c2_44, %c2_45] : memref<4x8xf32, #tpu.memory_space<smem>>
    %68 = vector.broadcast %67 : f32 to vector<1x128xf32>
    %69 = arith.mulf %5, %68 : vector<1x128xf32>
    %70 = arith.addf %66, %69 : vector<1x128xf32>
    %c3_46 = arith.constant 3 : index
    %c2_47 = arith.constant 2 : index
    %71 = memref.load %arg3[%c3_46, %c2_47] : memref<4x8xf32, #tpu.memory_space<smem>>
    %72 = vector.broadcast %71 : f32 to vector<1x128xf32>
    %73 = arith.mulf %7, %72 : vector<1x128xf32>
    %74 = arith.addf %70, %73 : vector<1x128xf32>
    %cst_48 = arith.constant 0.000000e+00 : f32
    %75 = vector.broadcast %cst_48 : f32 to vector<1x128xf32>
    %76 = arith.maximumf %74, %75 : vector<1x128xf32>
    %c0_49 = arith.constant 0 : index
    %c2_50 = arith.constant 2 : index
    %c0_51 = arith.constant 0 : index
    %c0_52 = arith.constant 0 : index
    %77 = vector.load %arg5[%c0_49, %c2_50, %c0_51, %c0_52] : memref<1x8x1x128xf32, #tpu.memory_space<vmem>>, vector<1x1x1x128xf32>
    %78 = vector.shape_cast %77 : vector<1x1x1x128xf32> to vector<1x128xf32>
    %79 = vector.shape_cast %76 : vector<1x128xf32> to vector<1x1x1x128xf32>
    tpu.vector_store %arg5[%c0_49, %c2_50, %c0_51, %c0_52], %79 {strides = array<i32>} : memref<1x8x1x128xf32, #tpu.memory_space<vmem>>, vector<1x1x1x128xf32>,
    %80 = arith.mulf %76, %76 : vector<1x128xf32>
    %81 = arith.addf %56, %80 : vector<1x128xf32>
    %c0_53 = arith.constant 0 : index
    %c3_54 = arith.constant 3 : index
    %82 = memref.load %arg3[%c0_53, %c3_54] : memref<4x8xf32, #tpu.memory_space<smem>>
    %83 = vector.broadcast %82 : f32 to vector<1x128xf32>
    %84 = arith.mulf %1, %83 : vector<1x128xf32>
    %c3_55 = arith.constant 3 : index
    %85 = memref.load %arg4[%c3_55] : memref<8xf32, #tpu.memory_space<smem>>
    %86 = vector.broadcast %85 : f32 to vector<1x128xf32>
    %87 = arith.addf %84, %86 : vector<1x128xf32>
    %c1_56 = arith.constant 1 : index
    %c3_57 = arith.constant 3 : index
    %88 = memref.load %arg3[%c1_56, %c3_57] : memref<4x8xf32, #tpu.memory_space<smem>>
    %89 = vector.broadcast %88 : f32 to vector<1x128xf32>
    %90 = arith.mulf %3, %89 : vector<1x128xf32>
    %91 = arith.addf %87, %90 : vector<1x128xf32>
    %c2_58 = arith.constant 2 : index
    %c3_59 = arith.constant 3 : index
    %92 = memref.load %arg3[%c2_58, %c3_59] : memref<4x8xf32, #tpu.memory_space<smem>>
    %93 = vector.broadcast %92 : f32 to vector<1x128xf32>
    %94 = arith.mulf %5, %93 : vector<1x128xf32>
    %95 = arith.addf %91, %94 : vector<1x128xf32>
    %c3_60 = arith.constant 3 : index
    %c3_61 = arith.constant 3 : index
    %96 = memref.load %arg3[%c3_60, %c3_61] : memref<4x8xf32, #tpu.memory_space<smem>>
    %97 = vector.broadcast %96 : f32 to vector<1x128xf32>
    %98 = arith.mulf %7, %97 : vector<1x128xf32>
    %99 = arith.addf %95, %98 : vector<1x128xf32>
    %cst_62 = arith.constant 0.000000e+00 : f32
    %100 = vector.broadcast %cst_62 : f32 to vector<1x128xf32>
    %101 = arith.maximumf %99, %100 : vector<1x128xf32>
    %c0_63 = arith.constant 0 : index
    %c3_64 = arith.constant 3 : index
    %c0_65 = arith.constant 0 : index
    %c0_66 = arith.constant 0 : index
    %102 = vector.load %arg5[%c0_63, %c3_64, %c0_65, %c0_66] : memref<1x8x1x128xf32, #tpu.memory_space<vmem>>, vector<1x1x1x128xf32>
    %103 = vector.shape_cast %102 : vector<1x1x1x128xf32> to vector<1x128xf32>
    %104 = vector.shape_cast %101 : vector<1x128xf32> to vector<1x1x1x128xf32>
    tpu.vector_store %arg5[%c0_63, %c3_64, %c0_65, %c0_66], %104 {strides = array<i32>} : memref<1x8x1x128xf32, #tpu.memory_space<vmem>>, vector<1x1x1x128xf32>,
    %105 = arith.mulf %101, %101 : vector<1x128xf32>
    %106 = arith.addf %81, %105 : vector<1x128xf32>
    %c0_67 = arith.constant 0 : index
    %c4 = arith.constant 4 : index
    %107 = memref.load %arg3[%c0_67, %c4] : memref<4x8xf32, #tpu.memory_space<smem>>
    %108 = vector.broadcast %107 : f32 to vector<1x128xf32>
    %109 = arith.mulf %1, %108 : vector<1x128xf32>
    %c4_68 = arith.constant 4 : index
    %110 = memref.load %arg4[%c4_68] : memref<8xf32, #tpu.memory_space<smem>>
    %111 = vector.broadcast %110 : f32 to vector<1x128xf32>
    %112 = arith.addf %109, %111 : vector<1x128xf32>
    %c1_69 = arith.constant 1 : index
    %c4_70 = arith.constant 4 : index
    %113 = memref.load %arg3[%c1_69, %c4_70] : memref<4x8xf32, #tpu.memory_space<smem>>
    %114 = vector.broadcast %113 : f32 to vector<1x128xf32>
    %115 = arith.mulf %3, %114 : vector<1x128xf32>
    %116 = arith.addf %112, %115 : vector<1x128xf32>
    %c2_71 = arith.constant 2 : index
    %c4_72 = arith.constant 4 : index
    %117 = memref.load %arg3[%c2_71, %c4_72] : memref<4x8xf32, #tpu.memory_space<smem>>
    %118 = vector.broadcast %117 : f32 to vector<1x128xf32>
    %119 = arith.mulf %5, %118 : vector<1x128xf32>
    %120 = arith.addf %116, %119 : vector<1x128xf32>
    %c3_73 = arith.constant 3 : index
    %c4_74 = arith.constant 4 : index
    %121 = memref.load %arg3[%c3_73, %c4_74] : memref<4x8xf32, #tpu.memory_space<smem>>
    %122 = vector.broadcast %121 : f32 to vector<1x128xf32>
    %123 = arith.mulf %7, %122 : vector<1x128xf32>
    %124 = arith.addf %120, %123 : vector<1x128xf32>
    %cst_75 = arith.constant 0.000000e+00 : f32
    %125 = vector.broadcast %cst_75 : f32 to vector<1x128xf32>
    %126 = arith.maximumf %124, %125 : vector<1x128xf32>
    %c0_76 = arith.constant 0 : index
    %c4_77 = arith.constant 4 : index
    %c0_78 = arith.constant 0 : index
    %c0_79 = arith.constant 0 : index
    %127 = vector.load %arg5[%c0_76, %c4_77, %c0_78, %c0_79] : memref<1x8x1x128xf32, #tpu.memory_space<vmem>>, vector<1x1x1x128xf32>
    %128 = vector.shape_cast %127 : vector<1x1x1x128xf32> to vector<1x128xf32>
    %129 = vector.shape_cast %126 : vector<1x128xf32> to vector<1x1x1x128xf32>
    tpu.vector_store %arg5[%c0_76, %c4_77, %c0_78, %c0_79], %129 {strides = array<i32>} : memref<1x8x1x128xf32, #tpu.memory_space<vmem>>, vector<1x1x1x128xf32>,
    %130 = arith.mulf %126, %126 : vector<1x128xf32>
    %131 = arith.addf %106, %130 : vector<1x128xf32>
    %c0_80 = arith.constant 0 : index
    %c5 = arith.constant 5 : index
    %132 = memref.load %arg3[%c0_80, %c5] : memref<4x8xf32, #tpu.memory_space<smem>>
    %133 = vector.broadcast %132 : f32 to vector<1x128xf32>
    %134 = arith.mulf %1, %133 : vector<1x128xf32>
    %c5_81 = arith.constant 5 : index
    %135 = memref.load %arg4[%c5_81] : memref<8xf32, #tpu.memory_space<smem>>
    %136 = vector.broadcast %135 : f32 to vector<1x128xf32>
    %137 = arith.addf %134, %136 : vector<1x128xf32>
    %c1_82 = arith.constant 1 : index
    %c5_83 = arith.constant 5 : index
    %138 = memref.load %arg3[%c1_82, %c5_83] : memref<4x8xf32, #tpu.memory_space<smem>>
    %139 = vector.broadcast %138 : f32 to vector<1x128xf32>
    %140 = arith.mulf %3, %139 : vector<1x128xf32>
    %141 = arith.addf %137, %140 : vector<1x128xf32>
    %c2_84 = arith.constant 2 : index
    %c5_85 = arith.constant 5 : index
    %142 = memref.load %arg3[%c2_84, %c5_85] : memref<4x8xf32, #tpu.memory_space<smem>>
    %143 = vector.broadcast %142 : f32 to vector<1x128xf32>
    %144 = arith.mulf %5, %143 : vector<1x128xf32>
    %145 = arith.addf %141, %144 : vector<1x128xf32>
    %c3_86 = arith.constant 3 : index
    %c5_87 = arith.constant 5 : index
    %146 = memref.load %arg3[%c3_86, %c5_87] : memref<4x8xf32, #tpu.memory_space<smem>>
    %147 = vector.broadcast %146 : f32 to vector<1x128xf32>
    %148 = arith.mulf %7, %147 : vector<1x128xf32>
    %149 = arith.addf %145, %148 : vector<1x128xf32>
    %cst_88 = arith.constant 0.000000e+00 : f32
    %150 = vector.broadcast %cst_88 : f32 to vector<1x128xf32>
    %151 = arith.maximumf %149, %150 : vector<1x128xf32>
    %c0_89 = arith.constant 0 : index
    %c5_90 = arith.constant 5 : index
    %c0_91 = arith.constant 0 : index
    %c0_92 = arith.constant 0 : index
    %152 = vector.load %arg5[%c0_89, %c5_90, %c0_91, %c0_92] : memref<1x8x1x128xf32, #tpu.memory_space<vmem>>, vector<1x1x1x128xf32>
    %153 = vector.shape_cast %152 : vector<1x1x1x128xf32> to vector<1x128xf32>
    %154 = vector.shape_cast %151 : vector<1x128xf32> to vector<1x1x1x128xf32>
    tpu.vector_store %arg5[%c0_89, %c5_90, %c0_91, %c0_92], %154 {strides = array<i32>} : memref<1x8x1x128xf32, #tpu.memory_space<vmem>>, vector<1x1x1x128xf32>,
    %155 = arith.mulf %151, %151 : vector<1x128xf32>
    %156 = arith.addf %131, %155 : vector<1x128xf32>
    %c0_93 = arith.constant 0 : index
    %c6 = arith.constant 6 : index
    %157 = memref.load %arg3[%c0_93, %c6] : memref<4x8xf32, #tpu.memory_space<smem>>
    %158 = vector.broadcast %157 : f32 to vector<1x128xf32>
    %159 = arith.mulf %1, %158 : vector<1x128xf32>
    %c6_94 = arith.constant 6 : index
    %160 = memref.load %arg4[%c6_94] : memref<8xf32, #tpu.memory_space<smem>>
    %161 = vector.broadcast %160 : f32 to vector<1x128xf32>
    %162 = arith.addf %159, %161 : vector<1x128xf32>
    %c1_95 = arith.constant 1 : index
    %c6_96 = arith.constant 6 : index
    %163 = memref.load %arg3[%c1_95, %c6_96] : memref<4x8xf32, #tpu.memory_space<smem>>
    %164 = vector.broadcast %163 : f32 to vector<1x128xf32>
    %165 = arith.mulf %3, %164 : vector<1x128xf32>
    %166 = arith.addf %162, %165 : vector<1x128xf32>
    %c2_97 = arith.constant 2 : index
    %c6_98 = arith.constant 6 : index
    %167 = memref.load %arg3[%c2_97, %c6_98] : memref<4x8xf32, #tpu.memory_space<smem>>
    %168 = vector.broadcast %167 : f32 to vector<1x128xf32>
    %169 = arith.mulf %5, %168 : vector<1x128xf32>
    %170 = arith.addf %166, %169 : vector<1x128xf32>
    %c3_99 = arith.constant 3 : index
    %c6_100 = arith.constant 6 : index
    %171 = memref.load %arg3[%c3_99, %c6_100] : memref<4x8xf32, #tpu.memory_space<smem>>
    %172 = vector.broadcast %171 : f32 to vector<1x128xf32>
    %173 = arith.mulf %7, %172 : vector<1x128xf32>
    %174 = arith.addf %170, %173 : vector<1x128xf32>
    %cst_101 = arith.constant 0.000000e+00 : f32
    %175 = vector.broadcast %cst_101 : f32 to vector<1x128xf32>
    %176 = arith.maximumf %174, %175 : vector<1x128xf32>
    %c0_102 = arith.constant 0 : index
    %c6_103 = arith.constant 6 : index
    %c0_104 = arith.constant 0 : index
    %c0_105 = arith.constant 0 : index
    %177 = vector.load %arg5[%c0_102, %c6_103, %c0_104, %c0_105] : memref<1x8x1x128xf32, #tpu.memory_space<vmem>>, vector<1x1x1x128xf32>
    %178 = vector.shape_cast %177 : vector<1x1x1x128xf32> to vector<1x128xf32>
    %179 = vector.shape_cast %176 : vector<1x128xf32> to vector<1x1x1x128xf32>
    tpu.vector_store %arg5[%c0_102, %c6_103, %c0_104, %c0_105], %179 {strides = array<i32>} : memref<1x8x1x128xf32, #tpu.memory_space<vmem>>, vector<1x1x1x128xf32>,
    %180 = arith.mulf %176, %176 : vector<1x128xf32>
    %181 = arith.addf %156, %180 : vector<1x128xf32>
    %c0_106 = arith.constant 0 : index
    %c7 = arith.constant 7 : index
    %182 = memref.load %arg3[%c0_106, %c7] : memref<4x8xf32, #tpu.memory_space<smem>>
    %183 = vector.broadcast %182 : f32 to vector<1x128xf32>
    %184 = arith.mulf %1, %183 : vector<1x128xf32>
    %c7_107 = arith.constant 7 : index
    %185 = memref.load %arg4[%c7_107] : memref<8xf32, #tpu.memory_space<smem>>
    %186 = vector.broadcast %185 : f32 to vector<1x128xf32>
    %187 = arith.addf %184, %186 : vector<1x128xf32>
    %c1_108 = arith.constant 1 : index
    %c7_109 = arith.constant 7 : index
    %188 = memref.load %arg3[%c1_108, %c7_109] : memref<4x8xf32, #tpu.memory_space<smem>>
    %189 = vector.broadcast %188 : f32 to vector<1x128xf32>
    %190 = arith.mulf %3, %189 : vector<1x128xf32>
    %191 = arith.addf %187, %190 : vector<1x128xf32>
    %c2_110 = arith.constant 2 : index
    %c7_111 = arith.constant 7 : index
    %192 = memref.load %arg3[%c2_110, %c7_111] : memref<4x8xf32, #tpu.memory_space<smem>>
    %193 = vector.broadcast %192 : f32 to vector<1x128xf32>
    %194 = arith.mulf %5, %193 : vector<1x128xf32>
    %195 = arith.addf %191, %194 : vector<1x128xf32>
    %c3_112 = arith.constant 3 : index
    %c7_113 = arith.constant 7 : index
    %196 = memref.load %arg3[%c3_112, %c7_113] : memref<4x8xf32, #tpu.memory_space<smem>>
    %197 = vector.broadcast %196 : f32 to vector<1x128xf32>
    %198 = arith.mulf %7, %197 : vector<1x128xf32>
    %199 = arith.addf %195, %198 : vector<1x128xf32>
    %cst_114 = arith.constant 0.000000e+00 : f32
    %200 = vector.broadcast %cst_114 : f32 to vector<1x128xf32>
    %201 = arith.maximumf %199, %200 : vector<1x128xf32>
    %c0_115 = arith.constant 0 : index
    %c7_116 = arith.constant 7 : index
    %c0_117 = arith.constant 0 : index
    %c0_118 = arith.constant 0 : index
    %202 = vector.load %arg5[%c0_115, %c7_116, %c0_117, %c0_118] : memref<1x8x1x128xf32, #tpu.memory_space<vmem>>, vector<1x1x1x128xf32>
    %203 = vector.shape_cast %202 : vector<1x1x1x128xf32> to vector<1x128xf32>
    %204 = vector.shape_cast %201 : vector<1x128xf32> to vector<1x1x1x128xf32>
    tpu.vector_store %arg5[%c0_115, %c7_116, %c0_117, %c0_118], %204 {strides = array<i32>} : memref<1x8x1x128xf32, #tpu.memory_space<vmem>>, vector<1x1x1x128xf32>,
    %205 = arith.mulf %201, %201 : vector<1x128xf32>
    %206 = arith.addf %181, %205 : vector<1x128xf32>
    %cst_119 = arith.constant 1.000000e-24 : f32
    %207 = vector.broadcast %cst_119 : f32 to vector<1x128xf32>
    %208 = arith.maximumf %206, %207 : vector<1x128xf32>
    %209 = math.rsqrt %208 : vector<1x128xf32>
    %c0_120 = arith.constant 0 : index
    %c0_121 = arith.constant 0 : index
    %c0_122 = arith.constant 0 : index
    %c0_123 = arith.constant 0 : index
    %210 = vector.load %arg5[%c0_120, %c0_121, %c0_122, %c0_123] : memref<1x8x1x128xf32, #tpu.memory_space<vmem>>, vector<1x1x1x128xf32>
    %211 = vector.shape_cast %210 : vector<1x1x1x128xf32> to vector<1x128xf32>
    %212 = arith.mulf %211, %209 : vector<1x128xf32>
    %c0_124 = arith.constant 0 : index
    %c0_125 = arith.constant 0 : index
    %c0_126 = arith.constant 0 : index
    %c0_127 = arith.constant 0 : index
    %213 = vector.load %arg5[%c0_124, %c0_125, %c0_126, %c0_127] : memref<1x8x1x128xf32, #tpu.memory_space<vmem>>, vector<1x1x1x128xf32>
    %214 = vector.shape_cast %213 : vector<1x1x1x128xf32> to vector<1x128xf32>
    %215 = vector.shape_cast %212 : vector<1x128xf32> to vector<1x1x1x128xf32>
    tpu.vector_store %arg5[%c0_124, %c0_125, %c0_126, %c0_127], %215 {strides = array<i32>} : memref<1x8x1x128xf32, #tpu.memory_space<vmem>>, vector<1x1x1x128xf32>,
    %c0_128 = arith.constant 0 : index
    %c1_129 = arith.constant 1 : index
    %c0_130 = arith.constant 0 : index
    %c0_131 = arith.constant 0 : index
    %216 = vector.load %arg5[%c0_128, %c1_129, %c0_130, %c0_131] : memref<1x8x1x128xf32, #tpu.memory_space<vmem>>, vector<1x1x1x128xf32>
    %217 = vector.shape_cast %216 : vector<1x1x1x128xf32> to vector<1x128xf32>
    %218 = arith.mulf %217, %209 : vector<1x128xf32>
    %c0_132 = arith.constant 0 : index
    %c1_133 = arith.constant 1 : index
    %c0_134 = arith.constant 0 : index
    %c0_135 = arith.constant 0 : index
    %219 = vector.load %arg5[%c0_132, %c1_133, %c0_134, %c0_135] : memref<1x8x1x128xf32, #tpu.memory_space<vmem>>, vector<1x1x1x128xf32>
    %220 = vector.shape_cast %219 : vector<1x1x1x128xf32> to vector<1x128xf32>
    %221 = vector.shape_cast %218 : vector<1x128xf32> to vector<1x1x1x128xf32>
    tpu.vector_store %arg5[%c0_132, %c1_133, %c0_134, %c0_135], %221 {strides = array<i32>} : memref<1x8x1x128xf32, #tpu.memory_space<vmem>>, vector<1x1x1x128xf32>,
    %c0_136 = arith.constant 0 : index
    %c2_137 = arith.constant 2 : index
    %c0_138 = arith.constant 0 : index
    %c0_139 = arith.constant 0 : index
    %222 = vector.load %arg5[%c0_136, %c2_137, %c0_138, %c0_139] : memref<1x8x1x128xf32, #tpu.memory_space<vmem>>, vector<1x1x1x128xf32>
    %223 = vector.shape_cast %222 : vector<1x1x1x128xf32> to vector<1x128xf32>
    %224 = arith.mulf %223, %209 : vector<1x128xf32>
    %c0_140 = arith.constant 0 : index
    %c2_141 = arith.constant 2 : index
    %c0_142 = arith.constant 0 : index
    %c0_143 = arith.constant 0 : index
    %225 = vector.load %arg5[%c0_140, %c2_141, %c0_142, %c0_143] : memref<1x8x1x128xf32, #tpu.memory_space<vmem>>, vector<1x1x1x128xf32>
    %226 = vector.shape_cast %225 : vector<1x1x1x128xf32> to vector<1x128xf32>
    %227 = vector.shape_cast %224 : vector<1x128xf32> to vector<1x1x1x128xf32>
    tpu.vector_store %arg5[%c0_140, %c2_141, %c0_142, %c0_143], %227 {strides = array<i32>} : memref<1x8x1x128xf32, #tpu.memory_space<vmem>>, vector<1x1x1x128xf32>,
    %c0_144 = arith.constant 0 : index
    %c3_145 = arith.constant 3 : index
    %c0_146 = arith.constant 0 : index
    %c0_147 = arith.constant 0 : index
    %228 = vector.load %arg5[%c0_144, %c3_145, %c0_146, %c0_147] : memref<1x8x1x128xf32, #tpu.memory_space<vmem>>, vector<1x1x1x128xf32>
    %229 = vector.shape_cast %228 : vector<1x1x1x128xf32> to vector<1x128xf32>
    %230 = arith.mulf %229, %209 : vector<1x128xf32>
    %c0_148 = arith.constant 0 : index
    %c3_149 = arith.constant 3 : index
    %c0_150 = arith.constant 0 : index
    %c0_151 = arith.constant 0 : index
    %231 = vector.load %arg5[%c0_148, %c3_149, %c0_150, %c0_151] : memref<1x8x1x128xf32, #tpu.memory_space<vmem>>, vector<1x1x1x128xf32>
    %232 = vector.shape_cast %231 : vector<1x1x1x128xf32> to vector<1x128xf32>
    %233 = vector.shape_cast %230 : vector<1x128xf32> to vector<1x1x1x128xf32>
    tpu.vector_store %arg5[%c0_148, %c3_149, %c0_150, %c0_151], %233 {strides = array<i32>} : memref<1x8x1x128xf32, #tpu.memory_space<vmem>>, vector<1x1x1x128xf32>,
    %c0_152 = arith.constant 0 : index
    %c4_153 = arith.constant 4 : index
    %c0_154 = arith.constant 0 : index
    %c0_155 = arith.constant 0 : index
    %234 = vector.load %arg5[%c0_152, %c4_153, %c0_154, %c0_155] : memref<1x8x1x128xf32, #tpu.memory_space<vmem>>, vector<1x1x1x128xf32>
    %235 = vector.shape_cast %234 : vector<1x1x1x128xf32> to vector<1x128xf32>
    %236 = arith.mulf %235, %209 : vector<1x128xf32>
    %c0_156 = arith.constant 0 : index
    %c4_157 = arith.constant 4 : index
    %c0_158 = arith.constant 0 : index
    %c0_159 = arith.constant 0 : index
    %237 = vector.load %arg5[%c0_156, %c4_157, %c0_158, %c0_159] : memref<1x8x1x128xf32, #tpu.memory_space<vmem>>, vector<1x1x1x128xf32>
    %238 = vector.shape_cast %237 : vector<1x1x1x128xf32> to vector<1x128xf32>
    %239 = vector.shape_cast %236 : vector<1x128xf32> to vector<1x1x1x128xf32>
    tpu.vector_store %arg5[%c0_156, %c4_157, %c0_158, %c0_159], %239 {strides = array<i32>} : memref<1x8x1x128xf32, #tpu.memory_space<vmem>>, vector<1x1x1x128xf32>,
    %c0_160 = arith.constant 0 : index
    %c5_161 = arith.constant 5 : index
    %c0_162 = arith.constant 0 : index
    %c0_163 = arith.constant 0 : index
    %240 = vector.load %arg5[%c0_160, %c5_161, %c0_162, %c0_163] : memref<1x8x1x128xf32, #tpu.memory_space<vmem>>, vector<1x1x1x128xf32>
    %241 = vector.shape_cast %240 : vector<1x1x1x128xf32> to vector<1x128xf32>
    %242 = arith.mulf %241, %209 : vector<1x128xf32>
    %c0_164 = arith.constant 0 : index
    %c5_165 = arith.constant 5 : index
    %c0_166 = arith.constant 0 : index
    %c0_167 = arith.constant 0 : index
    %243 = vector.load %arg5[%c0_164, %c5_165, %c0_166, %c0_167] : memref<1x8x1x128xf32, #tpu.memory_space<vmem>>, vector<1x1x1x128xf32>
    %244 = vector.shape_cast %243 : vector<1x1x1x128xf32> to vector<1x128xf32>
    %245 = vector.shape_cast %242 : vector<1x128xf32> to vector<1x1x1x128xf32>
    tpu.vector_store %arg5[%c0_164, %c5_165, %c0_166, %c0_167], %245 {strides = array<i32>} : memref<1x8x1x128xf32, #tpu.memory_space<vmem>>, vector<1x1x1x128xf32>,
    %c0_168 = arith.constant 0 : index
    %c6_169 = arith.constant 6 : index
    %c0_170 = arith.constant 0 : index
    %c0_171 = arith.constant 0 : index
    %246 = vector.load %arg5[%c0_168, %c6_169, %c0_170, %c0_171] : memref<1x8x1x128xf32, #tpu.memory_space<vmem>>, vector<1x1x1x128xf32>
    %247 = vector.shape_cast %246 : vector<1x1x1x128xf32> to vector<1x128xf32>
    %248 = arith.mulf %247, %209 : vector<1x128xf32>
    %c0_172 = arith.constant 0 : index
    %c6_173 = arith.constant 6 : index
    %c0_174 = arith.constant 0 : index
    %c0_175 = arith.constant 0 : index
    %249 = vector.load %arg5[%c0_172, %c6_173, %c0_174, %c0_175] : memref<1x8x1x128xf32, #tpu.memory_space<vmem>>, vector<1x1x1x128xf32>
    %250 = vector.shape_cast %249 : vector<1x1x1x128xf32> to vector<1x128xf32>
    %251 = vector.shape_cast %248 : vector<1x128xf32> to vector<1x1x1x128xf32>
    tpu.vector_store %arg5[%c0_172, %c6_173, %c0_174, %c0_175], %251 {strides = array<i32>} : memref<1x8x1x128xf32, #tpu.memory_space<vmem>>, vector<1x1x1x128xf32>,
    %c0_176 = arith.constant 0 : index
    %c7_177 = arith.constant 7 : index
    %c0_178 = arith.constant 0 : index
    %c0_179 = arith.constant 0 : index
    %252 = vector.load %arg5[%c0_176, %c7_177, %c0_178, %c0_179] : memref<1x8x1x128xf32, #tpu.memory_space<vmem>>, vector<1x1x1x128xf32>
    %253 = vector.shape_cast %252 : vector<1x1x1x128xf32> to vector<1x128xf32>
    %254 = arith.mulf %253, %209 : vector<1x128xf32>
    %c0_180 = arith.constant 0 : index
    %c7_181 = arith.constant 7 : index
    %c0_182 = arith.constant 0 : index
    %c0_183 = arith.constant 0 : index
    %255 = vector.load %arg5[%c0_180, %c7_181, %c0_182, %c0_183] : memref<1x8x1x128xf32, #tpu.memory_space<vmem>>, vector<1x1x1x128xf32>
    %256 = vector.shape_cast %255 : vector<1x1x1x128xf32> to vector<1x128xf32>
    %257 = vector.shape_cast %254 : vector<1x128xf32> to vector<1x1x1x128xf32>
    tpu.vector_store %arg5[%c0_180, %c7_181, %c0_182, %c0_183], %257 {strides = array<i32>} : memref<1x8x1x128xf32, #tpu.memory_space<vmem>>, vector<1x1x1x128xf32>,
    return
  }
  func.func @transform_0(%arg0: i32, %arg1: i32) -> (i32, i32, i32, i32) {
    %c0_i32 = arith.constant 0 : i32
    %c0_i32_0 = arith.constant 0 : i32
    %c0_i32_1 = arith.constant 0 : i32
    return %arg0, %c0_i32, %arg1, %c0_i32_0 : i32, i32, i32, i32
  }
  func.func @transform_1(%arg0: i32, %arg1: i32) -> (i32, i32) {
    %c0_i32 = arith.constant 0 : i32
    %c0_i32_0 = arith.constant 0 : i32
    %c0_i32_1 = arith.constant 0 : i32
    return %c0_i32, %c0_i32_0 : i32, i32
  }
  func.func @transform_2(%arg0: i32, %arg1: i32) -> i32 {
    %c0_i32 = arith.constant 0 : i32
    %c0_i32_0 = arith.constant 0 : i32
    return %c0_i32 : i32
  }
  func.func @transform_3(%arg0: i32, %arg1: i32) -> (i32, i32, i32, i32) {
    %c0_i32 = arith.constant 0 : i32
    %c0_i32_0 = arith.constant 0 : i32
    %c0_i32_1 = arith.constant 0 : i32
    return %arg0, %c0_i32, %arg1, %c0_i32_0 : i32, i32, i32, i32
  }
}

</mosaic_0001>

<llo_original>
// kernel: tpu_custom_call.1
$region0: #{tpu_custom_call.1}
  #allocation0 [shape = 'u32[]', space=smem, size = 0x4, offset = 0x4, fixed_abs, tag = 'smem constant byte address 0x4 - core index']
  #allocation1 [shape = 'u32[144,128]{1,0:T(1,128)}', space=vmem, size = 0x12000, scoped, tag = 'internal scratch']
  %s0 = inlined_call_operand.hbm [shape: f32[2,4,1,128], index: 0, kind: input, shape index: {}]
  %s1 = inlined_call_operand.hbm [shape: f32[4,8], index: 1, kind: input, shape index: {}]
  %s2 = inlined_call_operand.hbm [shape: f32[8], index: 2, kind: input, shape index: {}]
  %s3 = inlined_call_operand.hbm [shape: f32[2,8,1,128], index: 3, kind: output, shape index: {}]
  %s4 = sld [smem:[#allocation0]]
  $region57: #{tpu_custom_call.1} parent=0
    _
  %s6 = ssub.s32 1, %s4
  %s7 = scalar_select 0, %s6, %s4
  $region1: #{tpu_custom_call.1} parent=0
    #allocation2 [shape = 'u8[4096]{0}', space=vmem, size = 0x1000, scoped, tag = 'input window, operand 0']
    #allocation3 [shape = 's32[2]{0}', space=sflag, size = 0x8, scoped, tag = 'scoped memory for tpu_custom_call.1']
    #allocation4 [shape = 's32[2]{0}', space=sflag, size = 0x8, scoped, tag = 'scoped memory for tpu_custom_call.1']
    #allocation5 [shape = 's32[2]{0}', space=sflag, size = 0x8, scoped, tag = 'scoped memory for tpu_custom_call.1']
    #allocation6 [shape = 'u8[2048]{0}', space=smem, size = 0x800, scoped, tag = 'input window, operand 1, single buffered']
    #allocation7 [shape = 'u8[512]{0}', space=smem, size = 0x200, scoped, tag = 'input window, operand 2, single buffered']
    #allocation8 [shape = 's32[1]{0}', space=sflag, size = 0x4, scoped, tag = 'scoped memory for tpu_custom_call.1']
    #allocation9 [shape = 'u8[8192]{0}', space=vmem, size = 0x2000, scoped, tag = 'output window, operand 0']
    %8 = vsyncpa [#allocation3], 0
    %s9 = scalar_lea.sflag [#allocation3], 1
    %10 = vsyncpa %s9, 0
    %11 = vsyncpa [#allocation5], 0
    %12 = vsyncpa [#allocation8], 0
    %13 = vsyncpa [#allocation4], 0
    %s14 = scalar_lea.sflag [#allocation4], 1
    %15 = vsyncpa %s14, 0
    loop: start=0, step=1, limit=4
    $region2: #{tpu_custom_call.1} parent=1 // loop_pre_header
      _
    $region3: #{tpu_custom_call.1} parent=1 // loop_header
      %s17 = sphi 0, %s21
      %p18 = scmp.ge.s32.totalorder %s17, 4
      %s24 = sphi 0, %s36
      %s25 = sphi 0, %s32
      %s26 = sphi 0, %s24
      %s27 = sphi 0, %s25
      %s28 = sphi 0, %s26
      %s29 = sphi 0, %s27
      %s41 = sphi 0, %s43
      %s44 = sphi 0, %s41
      %s45 = sphi 0, %s44
      %s61 = sphi 0, %s45
      %s65 = sphi 0, %s65
      %s67 = sphi 0, %s65
      %s68 = sphi 0, %s67
      %s82 = sphi 0, %s68
      %s86 = sphi 0, %s86
      %s88 = sphi 0, %s86
      %s89 = sphi 0, %s88
      %s103 = sphi 0, %s89
      %s111 = sphi 0, %s113
      %s114 = sphi 0, %s111
      %s115 = sphi 0, %s114
      %s131 = sphi 0, %s115
    $region4: #{tpu_custom_call.1} parent=1 // loop_header_branch
      %20 = sbr.rel (%p18) target = $region8
    $region5: #{tpu_custom_call.1} parent=1 // loop_body
      %s22 = ssub.s32 %s17, 1
      %s23 = ssub.s32 %s17, 2
      %s30 = sadd.s32 1, %s25
      %p31 = scmp.ge.s32.totalorder %s30, 1
      %s32 = scalar_select %p31, 0, %s30
      %s33 = sadd.s32 1, %s24
      %s34 = scalar_select %p31, %s33, %s24
      %p35 = scmp.ge.s32.totalorder %s34, 2
      %s36 = scalar_select %p35, 0, %s34
      %s37 = ssub.s32 %s24, %s36
      %s38 = ssub.s32 %s25, %s32
      %s39 = sor.u32 %s37, %s38
      %p40 = scmp.eq.s32.totalorder %s39, 0
      %s42 = sadd.s32 %s41, 1
      %s43 = scalar_select %p40, %s41, %s42
      %p46 = pneg %p40
      %p47 = scmp.eq.s32.totalorder %s17, 1
      %p48 = por %p46, %p47
      %p49 = scmp.ne.s32.totalorder %s41, %s44
      %p50 = scmp.eq.s32.totalorder %s17, 0
      %p51 = por %p49, %p50
      %p52 = scmp.ne.s32.totalorder %s41, %s44
      %p53 = scmp.eq.s32.totalorder %s22, 1
      %p54 = por %p52, %p53
      %p55 = scmp.ne.s32.totalorder %s44, %s45
      %p56 = scmp.eq.s32.totalorder %s22, 0
      %p57 = por %p55, %p56
      %p58 = scmp.ne.s32.totalorder %s44, %s45
      %p59 = scmp.eq.s32.totalorder %s23, 1
      %p60 = por %p58, %p59
      %p62 = scmp.ne.s32.totalorder %s45, %s61
      %p63 = scmp.eq.s32.totalorder %s23, 0
      %p64 = por %p62, %p63
      %s66 = sadd.s32 %s65, 1
      %p69 = scmp.eq.s32.totalorder %s17, 1
      %p70 = scmp.ne.s32.totalorder %s65, %s67
      %p71 = scmp.eq.s32.totalorder %s17, 0
      %p72 = por %p70, %p71
      %p73 = scmp.ne.s32.totalorder %s65, %s67
      %p74 = scmp.eq.s32.totalorder %s22, 1
      %p75 = por %p73, %p74
      %p76 = scmp.ne.s32.totalorder %s67, %s68
      %p77 = scmp.eq.s32.totalorder %s22, 0
      %p78 = por %p76, %p77
      %p79 = scmp.ne.s32.totalorder %s67, %s68
      %p80 = scmp.eq.s32.totalorder %s23, 1
      %p81 = por %p79, %p80
      %p83 = scmp.ne.s32.totalorder %s68, %s82
      %p84 = scmp.eq.s32.totalorder %s23, 0
      %p85 = por %p83, %p84
      %s87 = sadd.s32 %s86, 1
      %p90 = scmp.eq.s32.totalorder %s17, 1
      %p91 = scmp.ne.s32.totalorder %s86, %s88
      %p92 = scmp.eq.s32.totalorder %s17, 0
      %p93 = por %p91, %p92
      %p94 = scmp.ne.s32.totalorder %s86, %s88
      %p95 = scmp.eq.s32.totalorder %s22, 1
      %p96 = por %p94, %p95
      %p97 = scmp.ne.s32.totalorder %s88, %s89
      %p98 = scmp.eq.s32.totalorder %s22, 0
      %p99 = por %p97, %p98
      %p100 = scmp.ne.s32.totalorder %s88, %s89
      %p101 = scmp.eq.s32.totalorder %s23, 1
      %p102 = por %p100, %p101
      %p104 = scmp.ne.s32.totalorder %s89, %s103
      %p105 = scmp.eq.s32.totalorder %s23, 0
      %p106 = por %p104, %p105
      %s107 = ssub.s32 %s24, %s36
      %s108 = ssub.s32 %s25, %s32
      %s109 = sor.u32 %s107, %s108
      %p110 = scmp.eq.s32.totalorder %s109, 0
      %s112 = sadd.s32 %s111, 1
      %s113 = scalar_select %p110, %s111, %s112
      %p116 = pneg %p110
      %p117 = scmp.eq.s32.totalorder %s17, 1
      %p118 = por %p116, %p117
      %p119 = scmp.ne.s32.totalorder %s111, %s114
      %p120 = scmp.eq.s32.totalorder %s17, 0
      %p121 = por %p119, %p120
      %p122 = scmp.ne.s32.totalorder %s111, %s114
      %p123 = scmp.eq.s32.totalorder %s22, 1
      %p124 = por %p122, %p123
      %p125 = scmp.ne.s32.totalorder %s114, %s115
      %p126 = scmp.eq.s32.totalorder %s22, 0
      %p127 = por %p125, %p126
      %p128 = scmp.ne.s32.totalorder %s114, %s115
      %p129 = scmp.eq.s32.totalorder %s23, 1
      %p130 = por %p128, %p129
      %p132 = scmp.ne.s32.totalorder %s115, %s131
      %p133 = scmp.eq.s32.totalorder %s23, 0
      %p134 = por %p132, %p133
      %p135 = scmp.le.s32.totalorder 1, %s17
      %p136 = scmp.lt.s32.totalorder %s17, 3
      %p137 = pnand %p135, %p136
      %p138 = pneg %p137
      // Predicated region
      $region9: #{tpu_custom_call.1} parent=5 // pred_check
        _
      $region10: #{tpu_custom_call.1} parent=5 // pred_check_branch
        %140 = sbr.rel (%p137) target = $region12
      $region11: #{tpu_custom_call.1} parent=5 // pred_region
        %s141 = ssub.s32 %s17, 1
        // Predicated region
        $region13: #{tpu_custom_call.1} parent=11 // pred_check
          %p142 = pneg %p78
        $region14: #{tpu_custom_call.1} parent=11 // pred_check_branch
          %144 = sbr.rel (%p142) target = $region16
        $region15: #{tpu_custom_call.1} parent=11 // pred_region
          %s146 = ssub.s32 64, 64
          %147 = vsyncadd [#allocation5], %s146
          %150 = dma.hbm_to_smem %s1, 64, [#allocation6], [#allocation5]
        $region16: #{tpu_custom_call.1} parent=11 // pred_fallthru
          _
        // Predicated region
        $region17: #{tpu_custom_call.1} parent=11 // pred_check
          %p151 = pneg %p99
        $region18: #{tpu_custom_call.1} parent=11 // pred_check_branch
          %153 = sbr.rel (%p151) target = $region20
        $region19: #{tpu_custom_call.1} parent=11 // pred_region
          %s155 = ssub.s32 16, 16
          %156 = vsyncadd [#allocation8], %s155
          %159 = dma.hbm_to_smem %s2, 16, [#allocation7], [#allocation8]
        $region20: #{tpu_custom_call.1} parent=11 // pred_fallthru
          _
      $region12: #{tpu_custom_call.1} parent=5 // pred_fallthru
        _
      %p160 = scmp.lt.s32.totalorder %s17, 2
      // Predicated region
      $region21: #{tpu_custom_call.1} parent=5 // pred_check
        %p161 = pneg %p160
      $region22: #{tpu_custom_call.1} parent=5 // pred_check_branch
        %163 = sbr.rel (%p161) target = $region24
      $region23: #{tpu_custom_call.1} parent=5 // pred_region
        // Predicated region
        $region25: #{tpu_custom_call.1} parent=23 // pred_check
          %p164 = pneg %p51
        $region26: #{tpu_custom_call.1} parent=23 // pred_check_branch
          %166 = sbr.rel (%p164) target = $region28
        $region27: #{tpu_custom_call.1} parent=23 // pred_region
          %s167 = sand.u32 %s41, 1
          %s168 = scalar_lea.sflag [#allocation3], %s167
          %s169 = sand.u32 %s41, 1
          %s170 = smul.addr %s169, 4
          %s171 = scalar_lea.vmem [#allocation2], %s170
          %s173 = ssub.s32 64, 64
          %174 = vsyncadd %s168, %s173
          %s175 = smul.addr %s24, 4
          %s176 = sadd.s32 %s25, %s175
          %s177 = smul.addr %s176, 16
          %s178 = scalar_lea.hbm %s0, %s177
          %s179 = sshll.u32 %s171, 4
          %s180 = int_to_ptr.vmem [resolvable:$true] %s179
          %185 = dma.hbm_to_vmem [thread:$0]  %s178, 64, %s180, %s168, 16, 16, 1
        $region28: #{tpu_custom_call.1} parent=23 // pred_fallthru
          _
      $region24: #{tpu_custom_call.1} parent=5 // pred_fallthru
        _
      %p186 = scmp.le.s32.totalorder 1, %s17
      %p187 = scmp.lt.s32.totalorder %s17, 3
      %p188 = pnand %p186, %p187
      %p189 = pneg %p188
      // Predicated region
      $region29: #{tpu_custom_call.1} parent=5 // pred_check
        _
      $region30: #{tpu_custom_call.1} parent=5 // pred_check_branch
        %191 = sbr.rel (%p188) target = $region32
      $region31: #{tpu_custom_call.1} parent=5 // pred_region
        %s192 = ssub.s32 %s17, 1
        %s193 = sand.u32 %s44, 1
        %s194 = scalar_lea.sflag [#allocation3], %s193
        %s195 = sand.u32 %s44, 1
        %s196 = smul.addr %s195, 4
        %s197 = scalar_lea.vmem [#allocation2], %s196
        // Predicated region
        $region33: #{tpu_custom_call.1} parent=31 // pred_check
          %p198 = pneg %p57
        $region34: #{tpu_custom_call.1} parent=31 // pred_check_branch
          %200 = sbr.rel (%p198) target = $region36
        $region35: #{tpu_custom_call.1} parent=31 // pred_region
          %201 = dma.done %s194, 64
        $region36: #{tpu_custom_call.1} parent=31 // pred_fallthru
          _
        // Predicated region
        $region37: #{tpu_custom_call.1} parent=31 // pred_check
          %p202 = pneg %p78
        $region38: #{tpu_custom_call.1} parent=31 // pred_check_branch
          %204 = sbr.rel (%p202) target = $region40
        $region39: #{tpu_custom_call.1} parent=31 // pred_region
          %205 = dma.done [#allocation5], 64
        $region40: #{tpu_custom_call.1} parent=31 // pred_fallthru
          _
        // Predicated region
        $region41: #{tpu_custom_call.1} parent=31 // pred_check
          %p206 = pneg %p99
        $region42: #{tpu_custom_call.1} parent=31 // pred_check_branch
          %208 = sbr.rel (%p206) target = $region44
        $region43: #{tpu_custom_call.1} parent=31 // pred_region
          %209 = dma.done [#allocation8], 16
        $region44: #{tpu_custom_call.1} parent=31 // pred_fallthru
          _
        %210 = sfence
        %s211 = sand.u32 %s44, 1
        %s212 = scalar_lea.sflag [#allocation3], %s211
        %s213 = sand.u32 %s44, 1
        %s214 = smul.addr %s213, 4
        %s215 = scalar_lea.vmem [#allocation2], %s214
        %p216 = pneg %p57
        %p217 = pneg %p54
        %p218 = pneg %p78
        %p219 = pneg %p75
        %p220 = pneg %p99
        %p221 = pneg %p96
        %p222 = pneg %p127
        %p223 = pneg %p124
        %s224 = sand.u32 %s114, 1
        %s225 = scalar_lea.sflag [#allocation4], %s224
        %s226 = sand.u32 %s114, 1
        %s227 = smul.addr %s226, 8
        %s228 = scalar_lea.vmem [#allocation9], %s227
        %v229 = vld [vmem:[%s197] sm:$0x1]
        %s230 = scalar_lea.vmem %s197, 1 [#allocation2]
        %v231 = vld [vmem:[%s230] sm:$0x1]
        %s232 = scalar_lea.vmem %s197, 2 [#allocation2]
        %v233 = vld [vmem:[%s232] sm:$0x1]
        %s234 = scalar_lea.vmem %s197, 3 [#allocation2]
        %v235 = vld [vmem:[%s234] sm:$0x1]
        %s236 = sld [smem:[#allocation6]]
        %v237 = vstv %s236
        %v238 = vmul.f32 %v229, %v237
        %s239 = sld [smem:[#allocation7]]
        %v240 = vstv %s239
        %v241 = vadd.f32 %v238, %v240
        %s242 = sld [smem:[#allocation6 + $0x80]]
        %v243 = vstv %s242
        %v244 = vmul.f32 %v231, %v243
        %v245 = vadd.f32 %v241, %v244
        %s246 = sld [smem:[#allocation6 + $0x100]]
        %v247 = vstv %s246
        %v248 = vmul.f32 %v233, %v247
        %v249 = vadd.f32 %v245, %v248
        %s250 = sld [smem:[#allocation6 + $0x180]]
        %v251 = vstv %s250
        %v252 = vmul.f32 %v235, %v251
        %v253 = vadd.f32 %v249, %v252
        %v254 = vmax.f32 %v253, 0.0
        %255 = vst [vmem:[%s228] sm:$0x1] %v254
        %v256 = vmul.f32 %v254, %v254
        %s257 = sld [smem:[#allocation6 + $0x1]]
        %v258 = vstv %s257
        %v259 = vmul.f32 %v229, %v258
        %s260 = sld [smem:[#allocation7 + $0x1]]
        %v261 = vstv %s260
        %v262 = vadd.f32 %v259, %v261
        %s263 = sld [smem:[#allocation6 + $0x81]]
        %v264 = vstv %s263
        %v265 = vmul.f32 %v231, %v264
        %v266 = vadd.f32 %v262, %v265
        %s267 = sld [smem:[#allocation6 + $0x101]]
        %v268 = vstv %s267
        %v269 = vmul.f32 %v233, %v268
        %v270 = vadd.f32 %v266, %v269
        %s271 = sld [smem:[#allocation6 + $0x181]]
        %v272 = vstv %s271
        %v273 = vmul.f32 %v235, %v272
        %v274 = vadd.f32 %v270, %v273
        %v275 = vmax.f32 %v274, 0.0
        %s276 = scalar_lea.vmem %s228, 1 [#allocation9]
        %277 = vst [vmem:[%s276] sm:$0x1] %v275
        %v278 = vmul.f32 %v275, %v275
        %v279 = vadd.f32 %v256, %v278
        %s280 = sld [smem:[#allocation6 + $0x2]]
        %v281 = vstv %s280
        %v282 = vmul.f32 %v229, %v281
        %s283 = sld [smem:[#allocation7 + $0x2]]
        %v284 = vstv %s283
        %v285 = vadd.f32 %v282, %v284
        %s286 = sld [smem:[#allocation6 + $0x82]]
        %v287 = vstv %s286
        %v288 = vmul.f32 %v231, %v287
        %v289 = vadd.f32 %v285, %v288
        %s290 = sld [smem:[#allocation6 + $0x102]]
        %v291 = vstv %s290
        %v292 = vmul.f32 %v233, %v291
        %v293 = vadd.f32 %v289, %v292
        %s294 = sld [smem:[#allocation6 + $0x182]]
        %v295 = vstv %s294
        %v296 = vmul.f32 %v235, %v295
        %v297 = vadd.f32 %v293, %v296
        %v298 = vmax.f32 %v297, 0.0
        %s299 = scalar_lea.vmem %s228, 2 [#allocation9]
        %300 = vst [vmem:[%s299] sm:$0x1] %v298
        %v301 = vmul.f32 %v298, %v298
        %v302 = vadd.f32 %v279, %v301
        %s303 = sld [smem:[#allocation6 + $0x3]]
        %v304 = vstv %s303
        %v305 = vmul.f32 %v229, %v304
        %s306 = sld [smem:[#allocation7 + $0x3]]
        %v307 = vstv %s306
        %v308 = vadd.f32 %v305, %v307
        %s309 = sld [smem:[#allocation6 + $0x83]]
        %v310 = vstv %s309
        %v311 = vmul.f32 %v231, %v310
        %v312 = vadd.f32 %v308, %v311
        %s313 = sld [smem:[#allocation6 + $0x103]]
        %v314 = vstv %s313
        %v315 = vmul.f32 %v233, %v314
        %v316 = vadd.f32 %v312, %v315
        %s317 = sld [smem:[#allocation6 + $0x183]]
        %v318 = vstv %s317
        %v319 = vmul.f32 %v235, %v318
        %v320 = vadd.f32 %v316, %v319
        %v321 = vmax.f32 %v320, 0.0
        %s322 = scalar_lea.vmem %s228, 3 [#allocation9]
        %323 = vst [vmem:[%s322] sm:$0x1] %v321
        %v324 = vmul.f32 %v321, %v321
        %v325 = vadd.f32 %v302, %v324
        %s326 = sld [smem:[#allocation6 + $0x4]]
        %v327 = vstv %s326
        %v328 = vmul.f32 %v229, %v327
        %s329 = sld [smem:[#allocation7 + $0x4]]
        %v330 = vstv %s329
        %v331 = vadd.f32 %v328, %v330
        %s332 = sld [smem:[#allocation6 + $0x84]]
        %v333 = vstv %s332
        %v334 = vmul.f32 %v231, %v333
        %v335 = vadd.f32 %v331, %v334
        %s336 = sld [smem:[#allocation6 + $0x104]]
        %v337 = vstv %s336
        %v338 = vmul.f32 %v233, %v337
        %v339 = vadd.f32 %v335, %v338
        %s340 = sld [smem:[#allocation6 + $0x184]]
        %v341 = vstv %s340
        %v342 = vmul.f32 %v235, %v341
        %v343 = vadd.f32 %v339, %v342
        %v344 = vmax.f32 %v343, 0.0
        %s345 = scalar_lea.vmem %s228, 4 [#allocation9]
        %346 = vst [vmem:[%s345] sm:$0x1] %v344
        %v347 = vmul.f32 %v344, %v344
        %v348 = vadd.f32 %v325, %v347
        %s349 = sld [smem:[#allocation6 + $0x5]]
        %v350 = vstv %s349
        %v351 = vmul.f32 %v229, %v350
        %s352 = sld [smem:[#allocation7 + $0x5]]
        %v353 = vstv %s352
        %v354 = vadd.f32 %v351, %v353
        %s355 = sld [smem:[#allocation6 + $0x85]]
        %v356 = vstv %s355
        %v357 = vmul.f32 %v231, %v356
        %v358 = vadd.f32 %v354, %v357
        %s359 = sld [smem:[#allocation6 + $0x105]]
        %v360 = vstv %s359
        %v361 = vmul.f32 %v233, %v360
        %v362 = vadd.f32 %v358, %v361
        %s363 = sld [smem:[#allocation6 + $0x185]]
        %v364 = vstv %s363
        %v365 = vmul.f32 %v235, %v364
        %v366 = vadd.f32 %v362, %v365
        %v367 = vmax.f32 %v366, 0.0
        %s368 = scalar_lea.vmem %s228, 5 [#allocation9]
        %369 = vst [vmem:[%s368] sm:$0x1] %v367
        %v370 = vmul.f32 %v367, %v367
        %v371 = vadd.f32 %v348, %v370
        %s372 = sld [smem:[#allocation6 + $0x6]]
        %v373 = vstv %s372
        %v374 = vmul.f32 %v229, %v373
        %s375 = sld [smem:[#allocation7 + $0x6]]
        %v376 = vstv %s375
        %v377 = vadd.f32 %v374, %v376
        %s378 = sld [smem:[#allocation6 + $0x86]]
        %v379 = vstv %s378
        %v380 = vmul.f32 %v231, %v379
        %v381 = vadd.f32 %v377, %v380
        %s382 = sld [smem:[#allocation6 + $0x106]]
        %v383 = vstv %s382
        %v384 = vmul.f32 %v233, %v383
        %v385 = vadd.f32 %v381, %v384
        %s386 = sld [smem:[#allocation6 + $0x186]]
        %v387 = vstv %s386
        %v388 = vmul.f32 %v235, %v387
        %v389 = vadd.f32 %v385, %v388
        %v390 = vmax.f32 %v389, 0.0
        %s391 = scalar_lea.vmem %s228, 6 [#allocation9]
        %392 = vst [vmem:[%s391] sm:$0x1] %v390
        %v393 = vmul.f32 %v390, %v390
        %v394 = vadd.f32 %v371, %v393
        %s395 = sld [smem:[#allocation6 + $0x7]]
        %v396 = vstv %s395
        %v397 = vmul.f32 %v229, %v396
        %s398 = sld [smem:[#allocation7 + $0x7]]
        %v399 = vstv %s398
        %v400 = vadd.f32 %v397, %v399
        %s401 = sld [smem:[#allocation6 + $0x87]]
        %v402 = vstv %s401
        %v403 = vmul.f32 %v231, %v402
        %v404 = vadd.f32 %v400, %v403
        %s405 = sld [smem:[#allocation6 + $0x107]]
        %v406 = vstv %s405
        %v407 = vmul.f32 %v233, %v406
        %v408 = vadd.f32 %v404, %v407
        %s409 = sld [smem:[#allocation6 + $0x187]]
        %v410 = vstv %s409
        %v411 = vmul.f32 %v235, %v410
        %v412 = vadd.f32 %v408, %v411
        %v413 = vmax.f32 %v412, 0.0
        %s414 = scalar_lea.vmem %s228, 7 [#allocation9]
        %415 = vst [vmem:[%s414] sm:$0x1] %v413
        %v416 = vmul.f32 %v413, %v413
        %v417 = vadd.f32 %v394, %v416
        %v418 = vmax.f32 %v417, 1e-24
        %v419 = vrsqrt.pop %v418
        %v420 = vld [vmem:[%s228] sm:$0x1]
        %v421 = vmul.f32 %v420, %v419
        %422 = vst [vmem:[%s228] sm:$0x1] %v421
        %v423 = vld [vmem:[%s276] sm:$0x1]
        %v424 = vmul.f32 %v423, %v419
        %425 = vst [vmem:[%s276] sm:$0x1] %v424
        %v426 = vld [vmem:[%s299] sm:$0x1]
        %v427 = vmul.f32 %v426, %v419
        %428 = vst [vmem:[%s299] sm:$0x1] %v427
        %v429 = vld [vmem:[%s322] sm:$0x1]
        %v430 = vmul.f32 %v429, %v419
        %431 = vst [vmem:[%s322] sm:$0x1] %v430
        %v432 = vld [vmem:[%s345] sm:$0x1]
        %v433 = vmul.f32 %v432, %v419
        %434 = vst [vmem:[%s345] sm:$0x1] %v433
        %v435 = vld [vmem:[%s368] sm:$0x1]
        %v436 = vmul.f32 %v435, %v419
        %437 = vst [vmem:[%s368] sm:$0x1] %v436
        %v438 = vld [vmem:[%s391] sm:$0x1]
        %v439 = vmul.f32 %v438, %v419
        %440 = vst [vmem:[%s391] sm:$0x1] %v439
        %v441 = vld [vmem:[%s414] sm:$0x1]
        %v442 = vmul.f32 %v441, %v419
        %443 = vst [vmem:[%s414] sm:$0x1] %v442
        %s444 = sand.u32 %s114, 1
        %s445 = scalar_lea.sflag [#allocation4], %s444
        %s446 = sand.u32 %s114, 1
        %s447 = smul.addr %s446, 8
        %s448 = scalar_lea.vmem [#allocation9], %s447
        // Predicated region
        $region45: #{tpu_custom_call.1} parent=31 // pred_check
          %p449 = pneg %p124
        $region46: #{tpu_custom_call.1} parent=31 // pred_check_branch
          %451 = sbr.rel (%p449) target = $region48
        $region47: #{tpu_custom_call.1} parent=31 // pred_region
          %s453 = ssub.s32 128, 128
          %454 = vsyncadd %s445, %s453
          %s455 = smul.addr %s26, 8
          %s456 = sadd.s32 %s27, %s455
          %s457 = smul.addr %s456, 16
          %s458 = scalar_lea.hbm %s3, %s457
          %s459 = sshll.u32 %s448, 4
          %s460 = int_to_ptr.vmem [resolvable:$true] %s459
          %465 = dma.vmem_to_hbm [thread:$0]  %s460, 128, %s458, %s445, 16, 16, 1
        $region48: #{tpu_custom_call.1} parent=31 // pred_fallthru
          _
      $region32: #{tpu_custom_call.1} parent=5 // pred_fallthru
        _
      %p466 = scmp.le.s32.totalorder 2, %s17
      // Predicated region
      $region49: #{tpu_custom_call.1} parent=5 // pred_check
        %p467 = pneg %p466
      $region50: #{tpu_custom_call.1} parent=5 // pred_check_branch
        %469 = sbr.rel (%p467) target = $region52
      $region51: #{tpu_custom_call.1} parent=5 // pred_region
        %s470 = ssub.s32 %s17, 2
        // Predicated region
        $region53: #{tpu_custom_call.1} parent=51 // pred_check
          %p471 = pneg %p130
        $region54: #{tpu_custom_call.1} parent=51 // pred_check_branch
          %473 = sbr.rel (%p471) target = $region56
        $region55: #{tpu_custom_call.1} parent=51 // pred_region
          %s474 = sand.u32 %s115, 1
          %s475 = scalar_lea.sflag [#allocation4], %s474
          %s476 = sand.u32 %s115, 1
          %s477 = smul.addr %s476, 8
          %s478 = scalar_lea.vmem [#allocation9], %s477
          %479 = dma.done %s475, 128
        $region56: #{tpu_custom_call.1} parent=51 // pred_fallthru
          _
      $region52: #{tpu_custom_call.1} parent=5 // pred_fallthru
        _
    $region6: #{tpu_custom_call.1} parent=1 // loop_footer
      %s21 = sadd.s32 1, %s17
    $region7: #{tpu_custom_call.1} parent=1 // loop_footer_branch
      %16 = sbr.rel target = $region3
    $region8: #{tpu_custom_call.1} parent=1 // loop_exit
      _
    %480 = vsyncpa [#allocation3], 1
    %s481 = scalar_lea.sflag [#allocation3], 1
    %482 = vsyncpa %s481, 1
    %483 = vsyncpa [#allocation4], 1
    %s484 = scalar_lea.sflag [#allocation4], 1
    %485 = vsyncpa %s484, 1
    %486 = vsyncpa [#allocation5], 1
    %s487 = scalar_lea.sflag [#allocation5], 1
    %488 = vsyncpa %s487, 1
    %489 = vsyncpa [#allocation8], 1

</llo_original>
